<compile_context>
chip_gen: v7x
topology: tpu7x:2x2x1
jax: 0.10.0
libtpu: 0.0.40
codegen_flags: <defaults>
</compile_context>

<pallas_src>
import jax
import jax.numpy as jnp
from jax.experimental import pallas as pl
from jax.experimental.pallas import tpu as pltpu


def _round_up(x, m):
    return ((x + m - 1) // m) * m


def fusion_head_kernel(audio_ref, vision_ref, w1a_ref, w1v_ref, b1_ref,
                       w2_ref, b2_ref, out_ref):
    # vision_ref: [TB, F, V] per-frame CLS tokens only.  The 1/F mean scale
    # is folded into w1v, so a plain frame sum is all that is needed here.
    video_cls = jnp.sum(vision_ref[...], axis=1)              # [TB, V]
    audio = audio_ref[...]                                    # [TB, A]

    # Fused "concat + first Linear":  [audio | video] @ [W1a ; W1v] + b1
    h = (jnp.dot(audio, w1a_ref[...], preferred_element_type=jnp.float32)
         + jnp.dot(video_cls, w1v_ref[...], preferred_element_type=jnp.float32)
         + b1_ref[...])                                       # [TB, H] fp32

    # Dropout(p) in eval mode is identity; then ReLU.
    h = jnp.maximum(h, 0.0)

    out = (jnp.dot(h.astype(w2_ref.dtype), w2_ref[...],
                   preferred_element_type=jnp.float32)
           + b2_ref[...])                                     # [TB, Lp] fp32
    out_ref[...] = out.astype(out_ref.dtype)


def fusion_model_head(audio_pooled, vision_hidden, params, batch_length, *,
                      batch_tile=128, compute_dtype=jnp.float32,
                      vmem_limit_bytes=None):
    """audio_pooled: [B, A]; vision_hidden: [B*F, T, V] (backbone outputs)."""
    w1a, w1v, b1, w2, b2 = params
    B = batch_length
    BF, T, V = vision_hidden.shape
    assert BF % B == 0, (
        "vision_hidden leading dim must equal batch_length * num_frames")
    F = BF // B
    A = audio_pooled.shape[1]
    H = w1a.shape[1]
    L = w2.shape[1]

    # ---- wrapper-side prep (cheap XLA ops; keeps the kernel DMA minimal) ---
    # CLS token only: [B, F, V].  Avoids DMA-ing T x the data actually used.
    vis_cls = vision_hidden.reshape(B, F, T, V)[:, :, 0, :]

    # Fold the 1/num_frames frame-mean scale into the vision slice of W1.
    w1v_scaled = w1v * (1.0 / F)

    # Lane-dense output: zero-pad the label dim to a multiple of 128 lanes.
    Lp = _round_up(max(L, 128), 128)
    w2_p = jnp.pad(w2, ((0, 0), (0, Lp - L)))
    b2_p = jnp.pad(b2, ((0, 0), (0, Lp - L)))

    # Batch tiling: pad B up to a multiple of the batch tile (tile itself a
    # multiple of 8 sublanes).  Tiny batches collapse to a single tile.
    assert batch_tile % 8 == 0, "batch_tile must be a multiple of 8"
    tb = min(batch_tile, _round_up(B, 8))
    B_pad = _round_up(B, tb)
    pad_b = B_pad - B

    audio_p = jnp.pad(audio_pooled, ((0, pad_b), (0, 0))).astype(compute_dtype)
    vis_p = jnp.pad(vis_cls, ((0, pad_b), (0, 0), (0, 0))).astype(compute_dtype)
    w1a_c = w1a.astype(compute_dtype)
    w1v_c = w1v_scaled.astype(compute_dtype)
    w2_c = w2_p.astype(compute_dtype)
    # Biases stay fp32 (added straight into the fp32 accumulators).
    b1_f32 = b1.astype(jnp.float32)
    b2_f32 = b2_p.astype(jnp.float32)

    cp_kwargs = dict(dimension_semantics=("parallel",))
    if vmem_limit_bytes is not None:
        cp_kwargs["vmem_limit_bytes"] = vmem_limit_bytes

    out = pl.pallas_call(
        fusion_head_kernel,
        out_shape=jax.ShapeDtypeStruct((B_pad, Lp), jnp.float32),
        grid=(B_pad // tb,),
        in_specs=[
            # activation stream: tiled over the batch axis
            pl.BlockSpec((tb, A), lambda i: (i, 0)),        # audio_pooled
            pl.BlockSpec((tb, F, V), lambda i: (i, 0, 0)),  # per-frame CLS
            # weights/biases: constant block index -> resident in VMEM,
            # not re-DMA'd per grid step
            pl.BlockSpec((A, H), lambda i: (0, 0)),         # W1 (audio rows)
            pl.BlockSpec((V, H), lambda i: (0, 0)),         # W1 (vision rows)
            pl.BlockSpec((1, H), lambda i: (0, 0)),         # b1
            pl.BlockSpec((H, Lp), lambda i: (0, 0)),        # W2 (lane-padded)
            pl.BlockSpec((1, Lp), lambda i: (0, 0)),        # b2 (lane-padded)
        ],
        out_specs=pl.BlockSpec((tb, Lp), lambda i: (i, 0)),
        compiler_params=pltpu.CompilerParams(**cp_kwargs),
    )(audio_p, vis_p, w1a_c, w1v_c, b1_f32, w2_c, b2_f32)

    return out[:B, :L]


def make_params(key, audio_dim, vision_dim, hidden, label_number):
    k1, k2, k3, k4 = jax.random.split(key, 4)
    fusion = audio_dim + vision_dim
    scale1 = 1.0 / jnp.sqrt(fusion)
    scale2 = 1.0 / jnp.sqrt(hidden)
    w1 = jax.random.normal(k1, (fusion, hidden), jnp.float32) * scale1
    b1 = jax.random.normal(k2, (1, hidden), jnp.float32) * scale1
    w2 = jax.random.normal(k3, (hidden, label_number), jnp.float32) * scale2
    b2 = jax.random.normal(k4, (1, label_number), jnp.float32) * scale2
    # split W1 into its audio-rows / vision-rows (implicit concat fusion)
    w1a = w1[:audio_dim]
    w1v = w1[audio_dim:]
    return (w1a, w1v, b1, w2, b2)


def reference(audio_pooled, vision_hidden, params, batch_length):
    w1a, w1v, b1, w2, b2 = params
    B = batch_length
    BF, T, V = vision_hidden.shape
    F = BF // B
    vis = vision_hidden.reshape(B, F, T, V)
    video_cls = vis[..., 0, :].sum(axis=1) / F
    fusion = jnp.concatenate([audio_pooled, video_cls], axis=1)
    w1 = jnp.concatenate([w1a, w1v], axis=0)
    h = jnp.maximum(fusion @ w1 + b1, 0.0)
    return h @ w2 + b2


if __name__ == "__main__":
    # Small synthetic shapes consistent with the forward pass.  B=12 with a
    # batch tile of 8 exercises batch tiling (2 grid steps) and row padding.
    B = 12           # batch_length
    F = 4            # frames per video
    T = 8            # nb_tokens (CLS + patches)
    A = 32           # audio embed dim (pooled)
    V = 32           # vision embed dim
    HIDDEN = 256     # classification head hidden size (as in the module)
    LABELS = 8       # args.label_number

    key = jax.random.PRNGKey(0)
    k_audio, k_vis, k_params = jax.random.split(key, 3)

    # Synthesized backbone outputs (stand-ins for CLAP / CLIP features).
    audio_pooled = jax.random.normal(k_audio, (B, A), jnp.float32)
    vision_hidden = jax.random.normal(k_vis, (B * F, T, V), jnp.float32)

    params = make_params(k_params, A, V, HIDDEN, LABELS)

    ref = reference(audio_pooled, vision_hidden, params, B)

    # fp32 path: exact match against the reference.
    out = fusion_model_head(audio_pooled, vision_hidden, params, B,
                            batch_tile=8)
    out = jax.block_until_ready(out)
    assert out.shape == (B, LABELS), out.shape
    assert jnp.allclose(out, ref, atol=1e-4, rtol=1e-4), (out, ref)

    print("KERNEL_OK")
</pallas_src>

<mosaic_0001>
module attributes {stable_mosaic.version = 11 : i64} {
  func.func @fusion_head_kernel(%arg0: i32, %arg1: memref<8x32xf32, #tpu.memory_space<vmem>>, %arg2: memref<8x4x32xf32, #tpu.memory_space<vmem>>, %arg3: memref<32x256xf32, #tpu.memory_space<vmem>>, %arg4: memref<32x256xf32, #tpu.memory_space<vmem>>, %arg5: memref<1x256xf32, #tpu.memory_space<vmem>>, %arg6: memref<256x128xf32, #tpu.memory_space<vmem>>, %arg7: memref<1x128xf32, #tpu.memory_space<vmem>>, %arg8: memref<8x128xf32, #tpu.memory_space<vmem>>) attributes {dimension_semantics = [#tpu.dimension_semantics<parallel>], iteration_bounds = array<i64: 2>, scalar_prefetch = 0 : i64, scratch_operands = 0 : i64, tpu.core_type = #tpu.core_type<tc>, window_params = [{transform_indices = @transform_0, window_bounds = array<i64: 8, 32>}, {transform_indices = @transform_1, window_bounds = array<i64: 8, 4, 32>}, {pipeline_mode = #tpu.pipeline_mode<synchronous>, transform_indices = @transform_2, window_bounds = array<i64: 32, 256>}, {pipeline_mode = #tpu.pipeline_mode<synchronous>, transform_indices = @transform_3, window_bounds = array<i64: 32, 256>}, {pipeline_mode = #tpu.pipeline_mode<synchronous>, transform_indices = @transform_4, window_bounds = array<i64: 1, 256>}, {pipeline_mode = #tpu.pipeline_mode<synchronous>, transform_indices = @transform_5, window_bounds = array<i64: 256, 128>}, {pipeline_mode = #tpu.pipeline_mode<synchronous>, transform_indices = @transform_6, window_bounds = array<i64: 1, 128>}, {transform_indices = @transform_7, window_bounds = array<i64: 8, 128>}]} {
    %c0 = arith.constant 0 : index
    %c0_0 = arith.constant 0 : index
    %c0_1 = arith.constant 0 : index
    %0 = vector.load %arg2[%c0, %c0_0, %c0_1] : memref<8x4x32xf32, #tpu.memory_space<vmem>>, vector<8x4x32xf32>
    %cst = arith.constant dense<0.000000e+00> : vector<8x32xf32>
    %1 = vector.multi_reduction <add>, %0, %cst [1] : vector<8x4x32xf32> to vector<8x32xf32>
    %c0_2 = arith.constant 0 : index
    %c0_3 = arith.constant 0 : index
    %2 = vector.load %arg1[%c0_2, %c0_3] : memref<8x32xf32, #tpu.memory_space<vmem>>, vector<8x32xf32>
    %c0_4 = arith.constant 0 : index
    %c0_5 = arith.constant 0 : index
    %3 = vector.load %arg3[%c0_4, %c0_5] : memref<32x256xf32, #tpu.memory_space<vmem>>, vector<32x256xf32>
    %cst_6 = arith.constant dense<0.000000e+00> : vector<8x256xf32>
    %4 = tpu.matmul %2, %3, %cst_6 {dimension_numbers = #tpu.dot_dimension_numbers<[1], [0], [0], [1], [0, 0, 1, 1], [], []>} : vector<8x32xf32>, vector<32x256xf32>, vector<8x256xf32> -> vector<8x256xf32>
    %c0_7 = arith.constant 0 : index
    %c0_8 = arith.constant 0 : index
    %5 = vector.load %arg4[%c0_7, %c0_8] : memref<32x256xf32, #tpu.memory_space<vmem>>, vector<32x256xf32>
    %cst_9 = arith.constant dense<0.000000e+00> : vector<8x256xf32>
    %6 = tpu.matmul %1, %5, %cst_9 {dimension_numbers = #tpu.dot_dimension_numbers<[1], [0], [0], [1], [0, 0, 1, 1], [], []>} : vector<8x32xf32>, vector<32x256xf32>, vector<8x256xf32> -> vector<8x256xf32>
    %7 = arith.addf %4, %6 : vector<8x256xf32>
    %c0_10 = arith.constant 0 : index
    %c0_11 = arith.constant 0 : index
    %8 = vector.load %arg5[%c0_10, %c0_11] : memref<1x256xf32, #tpu.memory_space<vmem>>, vector<1x256xf32>
    %9 = vector.broadcast %8 : vector<1x256xf32> to vector<8x256xf32>
    %10 = arith.addf %7, %9 : vector<8x256xf32>
    %cst_12 = arith.constant 0.000000e+00 : f32
    %11 = vector.broadcast %cst_12 : f32 to vector<8x256xf32>
    %12 = arith.maximumf %10, %11 : vector<8x256xf32>
    %c0_13 = arith.constant 0 : index
    %c0_14 = arith.constant 0 : index
    %13 = vector.load %arg6[%c0_13, %c0_14] : memref<256x128xf32, #tpu.memory_space<vmem>>, vector<256x128xf32>
    %cst_15 = arith.constant dense<0.000000e+00> : vector<8x128xf32>
    %14 = tpu.matmul %12, %13, %cst_15 {dimension_numbers = #tpu.dot_dimension_numbers<[1], [0], [0], [1], [0, 0, 1, 1], [], []>} : vector<8x256xf32>, vector<256x128xf32>, vector<8x128xf32> -> vector<8x128xf32>
    %c0_16 = arith.constant 0 : index
    %c0_17 = arith.constant 0 : index
    %15 = vector.load %arg7[%c0_16, %c0_17] : memref<1x128xf32, #tpu.memory_space<vmem>>, vector<1x128xf32>
    %16 = vector.broadcast %15 : vector<1x128xf32> to vector<8x128xf32>
    %17 = arith.addf %14, %16 : vector<8x128xf32>
    %c0_18 = arith.constant 0 : index
    %c0_19 = arith.constant 0 : index
    %18 = vector.load %arg8[%c0_18, %c0_19] : memref<8x128xf32, #tpu.memory_space<vmem>>, vector<8x128xf32>
    tpu.vector_store %arg8[%c0_18, %c0_19], %17 {strides = array<i32>} : memref<8x128xf32, #tpu.memory_space<vmem>>, vector<8x128xf32>,
    return
  }
  func.func @transform_0(%arg0: i32) -> (i32, i32) {
    %c0_i32 = arith.constant 0 : i32
    %c0_i32_0 = arith.constant 0 : i32
    return %arg0, %c0_i32 : i32, i32
  }
  func.func @transform_1(%arg0: i32) -> (i32, i32, i32) {
    %c0_i32 = arith.constant 0 : i32
    %c0_i32_0 = arith.constant 0 : i32
    %c0_i32_1 = arith.constant 0 : i32
    return %arg0, %c0_i32, %c0_i32_0 : i32, i32, i32
  }
  func.func @transform_2(%arg0: i32) -> (i32, i32) {
    %c0_i32 = arith.constant 0 : i32
    %c0_i32_0 = arith.constant 0 : i32
    %c0_i32_1 = arith.constant 0 : i32
    return %c0_i32, %c0_i32_0 : i32, i32
  }
  func.func @transform_3(%arg0: i32) -> (i32, i32) {
    %c0_i32 = arith.constant 0 : i32
    %c0_i32_0 = arith.constant 0 : i32
    %c0_i32_1 = arith.constant 0 : i32
    return %c0_i32, %c0_i32_0 : i32, i32
  }
  func.func @transform_4(%arg0: i32) -> (i32, i32) {
    %c0_i32 = arith.constant 0 : i32
    %c0_i32_0 = arith.constant 0 : i32
    %c0_i32_1 = arith.constant 0 : i32
    return %c0_i32, %c0_i32_0 : i32, i32
  }
  func.func @transform_5(%arg0: i32) -> (i32, i32) {
    %c0_i32 = arith.constant 0 : i32
    %c0_i32_0 = arith.constant 0 : i32
    %c0_i32_1 = arith.constant 0 : i32
    return %c0_i32, %c0_i32_0 : i32, i32
  }
  func.func @transform_6(%arg0: i32) -> (i32, i32) {
    %c0_i32 = arith.constant 0 : i32
    %c0_i32_0 = arith.constant 0 : i32
    %c0_i32_1 = arith.constant 0 : i32
    return %c0_i32, %c0_i32_0 : i32, i32
  }
  func.func @transform_7(%arg0: i32) -> (i32, i32) {
    %c0_i32 = arith.constant 0 : i32
    %c0_i32_0 = arith.constant 0 : i32
    return %arg0, %c0_i32 : i32, i32
  }
}

</mosaic_0001>

<llo_original>
// kernel: tpu_custom_call.1
$region0: #{tpu_custom_call.1}
  #allocation0 [shape = 'u32[]', space=smem, size = 0x4, offset = 0x4, fixed_abs, tag = 'smem constant byte address 0x4 - core index']
  #allocation1 [shape = 'u32[144,128]{1,0:T(1,128)}', space=vmem, size = 0x12000, scoped, tag = 'internal scratch']
  %s0 = inlined_call_operand.hbm [shape: f32[16,32], index: 0, kind: input, shape index: {}]
  %s1 = inlined_call_operand.hbm [shape: f32[16,4,32], index: 1, kind: input, shape index: {}]
  %s2 = inlined_call_operand.hbm [shape: f32[32,256], index: 2, kind: input, shape index: {}]
  %s3 = inlined_call_operand.hbm [shape: f32[32,256], index: 3, kind: input, shape index: {}]
  %s4 = inlined_call_operand.vmem [shape: f32[1,256], index: 4, kind: input, shape index: {}]
  %s5 = inlined_call_operand.hbm [shape: f32[256,128], index: 5, kind: input, shape index: {}]
  %s6 = inlined_call_operand.vmem [shape: f32[1,128], index: 6, kind: input, shape index: {}]
  %s7 = inlined_call_operand.hbm [shape: f32[16,128], index: 7, kind: output, shape index: {}]
  %s8 = sld [smem:[#allocation0]]
  $region81: #{tpu_custom_call.1} parent=0
    _
  %s10 = ssub.s32 1, %s8
  %s11 = scalar_select 0, %s10, %s8
  $region1: #{tpu_custom_call.1} parent=0
    #allocation2 [shape = 'u8[8192]{0}', space=vmem, size = 0x2000, scoped, tag = 'input window, operand 0']
    #allocation3 [shape = 's32[2]{0}', space=sflag, size = 0x8, scoped, tag = 'scoped memory for tpu_custom_call.1']
    #allocation4 [shape = 's32[2]{0}', space=sflag, size = 0x8, scoped, tag = 'scoped memory for tpu_custom_call.1']
    #allocation5 [shape = 'u8[32768]{0}', space=vmem, size = 0x8000, scoped, tag = 'input window, operand 1']
    #allocation6 [shape = 's32[2]{0}', space=sflag, size = 0x8, scoped, tag = 'scoped memory for tpu_custom_call.1']
    #allocation7 [shape = 'u8[32768]{0}', space=vmem, size = 0x8000, scoped, tag = 'input window, operand 2, single buffered']
    #allocation8 [shape = 'u8[32768]{0}', space=vmem, size = 0x8000, scoped, tag = 'input window, operand 3, single buffered']
    #allocation9 [shape = 's32[1]{0}', space=sflag, size = 0x4, scoped, tag = 'scoped memory for tpu_custom_call.1']
    #allocation10 [shape = 'u8[131072]{0}', space=vmem, size = 0x20000, scoped, tag = 'input window, operand 5, single buffered']
    #allocation11 [shape = 'u8[8192]{0}', space=vmem, size = 0x2000, scoped, tag = 'output window, operand 0']
    %12 = vsyncpa [#allocation3], 0
    %s13 = scalar_lea.sflag [#allocation3], 1
    %14 = vsyncpa %s13, 0
    %15 = vsyncpa [#allocation6], 0
    %s16 = scalar_lea.sflag [#allocation6], 1
    %17 = vsyncpa %s16, 0
    %18 = vsyncpa [#allocation9], 0
    %19 = vsyncpa [#allocation4], 0
    %s20 = scalar_lea.sflag [#allocation4], 1
    %21 = vsyncpa %s20, 0
    loop: start=0, step=1, limit=4
    $region2: #{tpu_custom_call.1} parent=1 // loop_pre_header
      _
    $region3: #{tpu_custom_call.1} parent=1 // loop_header
      %s23 = sphi 0, %s27
      %p24 = scmp.ge.s32.totalorder %s23, 4
      %s33 = sphi 0, %s35
      %s36 = sphi 0, %s33
      %s37 = sphi 0, %s36
      %s53 = sphi 0, %s37
      %s59 = sphi 0, %s61
      %s62 = sphi 0, %s59
      %s63 = sphi 0, %s62
      %s79 = sphi 0, %s63
      %s83 = sphi 0, %s83
      %s85 = sphi 0, %s83
      %s86 = sphi 0, %s85
      %s100 = sphi 0, %s86
      %s104 = sphi 0, %s104
      %s106 = sphi 0, %s104
      %s107 = sphi 0, %s106
      %s121 = sphi 0, %s107
      %s125 = sphi 0, %s125
      %s127 = sphi 0, %s125
      %s128 = sphi 0, %s127
      %s142 = sphi 0, %s128
      %s146 = sphi 0, %s146
      %s148 = sphi 0, %s146
      %s149 = sphi 0, %s148
      %s163 = sphi 0, %s149
      %s167 = sphi 0, %s167
      %s169 = sphi 0, %s167
      %s170 = sphi 0, %s169
      %s184 = sphi 0, %s170
      %s190 = sphi 0, %s192
      %s193 = sphi 0, %s190
      %s194 = sphi 0, %s193
      %s210 = sphi 0, %s194
    $region4: #{tpu_custom_call.1} parent=1 // loop_header_branch
      %26 = sbr.rel (%p24) target = $region8
    $region5: #{tpu_custom_call.1} parent=1 // loop_body
      %s28 = ssub.s32 %s23, 1
      %s29 = ssub.s32 %s23, 2
      %s30 = sadd.s32 %s23, 1
      %s31 = ssub.s32 %s23, %s30
      %p32 = scmp.eq.s32.totalorder %s31, 0
      %s34 = sadd.s32 %s33, 1
      %s35 = scalar_select %p32, %s33, %s34
      %p38 = pneg %p32
      %p39 = scmp.eq.s32.totalorder %s23, 1
      %p40 = por %p38, %p39
      %p41 = scmp.ne.s32.totalorder %s33, %s36
      %p42 = scmp.eq.s32.totalorder %s23, 0
      %p43 = por %p41, %p42
      %p44 = scmp.ne.s32.totalorder %s33, %s36
      %p45 = scmp.eq.s32.totalorder %s28, 1
      %p46 = por %p44, %p45
      %p47 = scmp.ne.s32.totalorder %s36, %s37
      %p48 = scmp.eq.s32.totalorder %s28, 0
      %p49 = por %p47, %p48
      %p50 = scmp.ne.s32.totalorder %s36, %s37
      %p51 = scmp.eq.s32.totalorder %s29, 1
      %p52 = por %p50, %p51
      %p54 = scmp.ne.s32.totalorder %s37, %s53
      %p55 = scmp.eq.s32.totalorder %s29, 0
      %p56 = por %p54, %p55
      %s57 = ssub.s32 %s23, %s30
      %p58 = scmp.eq.s32.totalorder %s57, 0
      %s60 = sadd.s32 %s59, 1
      %s61 = scalar_select %p58, %s59, %s60
      %p64 = pneg %p58
      %p65 = scmp.eq.s32.totalorder %s23, 1
      %p66 = por %p64, %p65
      %p67 = scmp.ne.s32.totalorder %s59, %s62
      %p68 = scmp.eq.s32.totalorder %s23, 0
      %p69 = por %p67, %p68
      %p70 = scmp.ne.s32.totalorder %s59, %s62
      %p71 = scmp.eq.s32.totalorder %s28, 1
      %p72 = por %p70, %p71
      %p73 = scmp.ne.s32.totalorder %s62, %s63
      %p74 = scmp.eq.s32.totalorder %s28, 0
      %p75 = por %p73, %p74
      %p76 = scmp.ne.s32.totalorder %s62, %s63
      %p77 = scmp.eq.s32.totalorder %s29, 1
      %p78 = por %p76, %p77
      %p80 = scmp.ne.s32.totalorder %s63, %s79
      %p81 = scmp.eq.s32.totalorder %s29, 0
      %p82 = por %p80, %p81
      %s84 = sadd.s32 %s83, 1
      %p87 = scmp.eq.s32.totalorder %s23, 1
      %p88 = scmp.ne.s32.totalorder %s83, %s85
      %p89 = scmp.eq.s32.totalorder %s23, 0
      %p90 = por %p88, %p89
      %p91 = scmp.ne.s32.totalorder %s83, %s85
      %p92 = scmp.eq.s32.totalorder %s28, 1
      %p93 = por %p91, %p92
      %p94 = scmp.ne.s32.totalorder %s85, %s86
      %p95 = scmp.eq.s32.totalorder %s28, 0
      %p96 = por %p94, %p95
      %p97 = scmp.ne.s32.totalorder %s85, %s86
      %p98 = scmp.eq.s32.totalorder %s29, 1
      %p99 = por %p97, %p98
      %p101 = scmp.ne.s32.totalorder %s86, %s100
      %p102 = scmp.eq.s32.totalorder %s29, 0
      %p103 = por %p101, %p102
      %s105 = sadd.s32 %s104, 1
      %p108 = scmp.eq.s32.totalorder %s23, 1
      %p109 = scmp.ne.s32.totalorder %s104, %s106
      %p110 = scmp.eq.s32.totalorder %s23, 0
      %p111 = por %p109, %p110
      %p112 = scmp.ne.s32.totalorder %s104, %s106
      %p113 = scmp.eq.s32.totalorder %s28, 1
      %p114 = por %p112, %p113
      %p115 = scmp.ne.s32.totalorder %s106, %s107
      %p116 = scmp.eq.s32.totalorder %s28, 0
      %p117 = por %p115, %p116
      %p118 = scmp.ne.s32.totalorder %s106, %s107
      %p119 = scmp.eq.s32.totalorder %s29, 1
      %p120 = por %p118, %p119
      %p122 = scmp.ne.s32.totalorder %s107, %s121
      %p123 = scmp.eq.s32.totalorder %s29, 0
      %p124 = por %p122, %p123
      %s126 = sadd.s32 %s125, 1
      %p129 = scmp.eq.s32.totalorder %s23, 1
      %p130 = scmp.ne.s32.totalorder %s125, %s127
      %p131 = scmp.eq.s32.totalorder %s23, 0
      %p132 = por %p130, %p131
      %p133 = scmp.ne.s32.totalorder %s125, %s127
      %p134 = scmp.eq.s32.totalorder %s28, 1
      %p135 = por %p133, %p134
      %p136 = scmp.ne.s32.totalorder %s127, %s128
      %p137 = scmp.eq.s32.totalorder %s28, 0
      %p138 = por %p136, %p137
      %p139 = scmp.ne.s32.totalorder %s127, %s128
      %p140 = scmp.eq.s32.totalorder %s29, 1
      %p141 = por %p139, %p140
      %p143 = scmp.ne.s32.totalorder %s128, %s142
      %p144 = scmp.eq.s32.totalorder %s29, 0
      %p145 = por %p143, %p144
      %s147 = sadd.s32 %s146, 1
      %p150 = scmp.eq.s32.totalorder %s23, 1
      %p151 = scmp.ne.s32.totalorder %s146, %s148
      %p152 = scmp.eq.s32.totalorder %s23, 0
      %p153 = por %p151, %p152
      %p154 = scmp.ne.s32.totalorder %s146, %s148
      %p155 = scmp.eq.s32.totalorder %s28, 1
      %p156 = por %p154, %p155
      %p157 = scmp.ne.s32.totalorder %s148, %s149
      %p158 = scmp.eq.s32.totalorder %s28, 0
      %p159 = por %p157, %p158
      %p160 = scmp.ne.s32.totalorder %s148, %s149
      %p161 = scmp.eq.s32.totalorder %s29, 1
      %p162 = por %p160, %p161
      %p164 = scmp.ne.s32.totalorder %s149, %s163
      %p165 = scmp.eq.s32.totalorder %s29, 0
      %p166 = por %p164, %p165
      %s168 = sadd.s32 %s167, 1
      %p171 = scmp.eq.s32.totalorder %s23, 1
      %p172 = scmp.ne.s32.totalorder %s167, %s169
      %p173 = scmp.eq.s32.totalorder %s23, 0
      %p174 = por %p172, %p173
      %p175 = scmp.ne.s32.totalorder %s167, %s169
      %p176 = scmp.eq.s32.totalorder %s28, 1
      %p177 = por %p175, %p176
      %p178 = scmp.ne.s32.totalorder %s169, %s170
      %p179 = scmp.eq.s32.totalorder %s28, 0
      %p180 = por %p178, %p179
      %p181 = scmp.ne.s32.totalorder %s169, %s170
      %p182 = scmp.eq.s32.totalorder %s29, 1
      %p183 = por %p181, %p182
      %p185 = scmp.ne.s32.totalorder %s170, %s184
      %p186 = scmp.eq.s32.totalorder %s29, 0
      %p187 = por %p185, %p186
      %s188 = ssub.s32 %s23, %s30
      %p189 = scmp.eq.s32.totalorder %s188, 0
      %s191 = sadd.s32 %s190, 1
      %s192 = scalar_select %p189, %s190, %s191
      %p195 = pneg %p189
      %p196 = scmp.eq.s32.totalorder %s23, 1
      %p197 = por %p195, %p196
      %p198 = scmp.ne.s32.totalorder %s190, %s193
      %p199 = scmp.eq.s32.totalorder %s23, 0
      %p200 = por %p198, %p199
      %p201 = scmp.ne.s32.totalorder %s190, %s193
      %p202 = scmp.eq.s32.totalorder %s28, 1
      %p203 = por %p201, %p202
      %p204 = scmp.ne.s32.totalorder %s193, %s194
      %p205 = scmp.eq.s32.totalorder %s28, 0
      %p206 = por %p204, %p205
      %p207 = scmp.ne.s32.totalorder %s193, %s194
      %p208 = scmp.eq.s32.totalorder %s29, 1
      %p209 = por %p207, %p208
      %p211 = scmp.ne.s32.totalorder %s194, %s210
      %p212 = scmp.eq.s32.totalorder %s29, 0
      %p213 = por %p211, %p212
      %p214 = scmp.le.s32.totalorder 1, %s23
      %p215 = scmp.lt.s32.totalorder %s23, 3
      %p216 = pnand %p214, %p215
      %p217 = pneg %p216
      // Predicated region
      $region9: #{tpu_custom_call.1} parent=5 // pred_check
        _
      $region10: #{tpu_custom_call.1} parent=5 // pred_check_branch
        %219 = sbr.rel (%p216) target = $region12
      $region11: #{tpu_custom_call.1} parent=5 // pred_region
        %s220 = ssub.s32 %s23, 1
        // Predicated region
        $region13: #{tpu_custom_call.1} parent=11 // pred_check
          %p221 = pneg %p96
        $region14: #{tpu_custom_call.1} parent=11 // pred_check_branch
          %223 = sbr.rel (%p221) target = $region16
        $region15: #{tpu_custom_call.1} parent=11 // pred_region
          %s225 = ssub.s32 1024, 1024
          %226 = vsyncadd [#allocation6], %s225
          %s227 = sshll.u32 [#allocation7], 4
          %s228 = int_to_ptr.vmem [resolvable:$true] %s227
          %233 = dma.hbm_to_vmem [thread:$0]  %s2, 1024, %s228, [#allocation6], 256, 256, 16
        $region16: #{tpu_custom_call.1} parent=11 // pred_fallthru
          _
        // Predicated region
        $region17: #{tpu_custom_call.1} parent=11 // pred_check
          %p234 = pneg %p117
        $region18: #{tpu_custom_call.1} parent=11 // pred_check_branch
          %236 = sbr.rel (%p234) target = $region20
        $region19: #{tpu_custom_call.1} parent=11 // pred_region
          %s238 = ssub.s32 1024, 1024
          %239 = vsyncadd [#allocation9], %s238
          %s240 = sshll.u32 [#allocation8], 4
          %s241 = int_to_ptr.vmem [resolvable:$true] %s240
          %246 = dma.hbm_to_vmem [thread:$0]  %s3, 1024, %s241, [#allocation9], 256, 256, 16
        $region20: #{tpu_custom_call.1} parent=11 // pred_fallthru
          _
        // Predicated region
        $region21: #{tpu_custom_call.1} parent=11 // pred_check
          %p247 = pneg %p138
        $region22: #{tpu_custom_call.1} parent=11 // pred_check_branch
          %249 = sbr.rel (%p247) target = $region24
        $region23: #{tpu_custom_call.1} parent=11 // pred_region
          _
        $region24: #{tpu_custom_call.1} parent=11 // pred_fallthru
          _
        // Predicated region
        $region25: #{tpu_custom_call.1} parent=11 // pred_check
          %p250 = pneg %p159
        $region26: #{tpu_custom_call.1} parent=11 // pred_check_branch
          %252 = sbr.rel (%p250) target = $region28
        $region27: #{tpu_custom_call.1} parent=11 // pred_region
          %s254 = ssub.s32 4096, 4096
          %255 = vsyncadd [#allocation9], %s254
          %s256 = sshll.u32 [#allocation10], 4
          %s257 = int_to_ptr.vmem [resolvable:$true] %s256
          %262 = dma.hbm_to_vmem [thread:$0]  %s5, 4096, %s257, [#allocation9], 128, 128, 8
        $region28: #{tpu_custom_call.1} parent=11 // pred_fallthru
          _
        // Predicated region
        $region29: #{tpu_custom_call.1} parent=11 // pred_check
          %p263 = pneg %p180
        $region30: #{tpu_custom_call.1} parent=11 // pred_check_branch
          %265 = sbr.rel (%p263) target = $region32
        $region31: #{tpu_custom_call.1} parent=11 // pred_region
          _
        $region32: #{tpu_custom_call.1} parent=11 // pred_fallthru
          _
      $region12: #{tpu_custom_call.1} parent=5 // pred_fallthru
        _
      %p266 = scmp.lt.s32.totalorder %s23, 2
      // Predicated region
      $region33: #{tpu_custom_call.1} parent=5 // pred_check
        %p267 = pneg %p266
      $region34: #{tpu_custom_call.1} parent=5 // pred_check_branch
        %269 = sbr.rel (%p267) target = $region36
      $region35: #{tpu_custom_call.1} parent=5 // pred_region
        // Predicated region
        $region37: #{tpu_custom_call.1} parent=35 // pred_check
          %p270 = pneg %p43
        $region38: #{tpu_custom_call.1} parent=35 // pred_check_branch
          %272 = sbr.rel (%p270) target = $region40
        $region39: #{tpu_custom_call.1} parent=35 // pred_region
          %s273 = sand.u32 %s33, 1
          %s274 = scalar_lea.sflag [#allocation3], %s273
          %s275 = sand.u32 %s33, 1
          %s276 = smul.addr %s275, 8
          %s277 = scalar_lea.vmem [#allocation2], %s276
          %s279 = ssub.s32 128, 128
          %280 = vsyncadd %s274, %s279
          %s281 = smul.addr %s23, 128
          %s282 = scalar_lea.hbm %s0, %s281
          %s284 = sshll.u32 %s277, 4
          %s285 = int_to_ptr.vmem [resolvable:$true] %s284
          %287 = dma.hbm_to_vmem [thread:$0]  %s282, 128, %s285, %s274
        $region40: #{tpu_custom_call.1} parent=35 // pred_fallthru
          _
        // Predicated region
        $region41: #{tpu_custom_call.1} parent=35 // pred_check
          %p288 = pneg %p69
        $region42: #{tpu_custom_call.1} parent=35 // pred_check_branch
          %290 = sbr.rel (%p288) target = $region44
        $region43: #{tpu_custom_call.1} parent=35 // pred_region
          %s291 = sand.u32 %s23, 1
          %s292 = scalar_lea.sflag [#allocation6], %s291
          %s293 = sand.u32 %s59, 1
          %s294 = smul.addr %s293, 32
          %s295 = scalar_lea.vmem [#allocation5], %s294
          %s296 = smul.u32 8, %s23
          %s298 = ssub.s32 512, 512
          %299 = vsyncadd %s292, %s298
          %s300 = smul.addr %s296, 64
          %s301 = scalar_lea.hbm %s1, %s300
          %s302 = sshll.u32 %s295, 4
          %s303 = int_to_ptr.vmem [resolvable:$true] %s302
          %308 = dma.hbm_to_vmem [thread:$0]  %s301, 512, %s303, %s292, 64, 64, 4
        $region44: #{tpu_custom_call.1} parent=35 // pred_fallthru
          _
      $region36: #{tpu_custom_call.1} parent=5 // pred_fallthru
        _
      %p309 = scmp.le.s32.totalorder 1, %s23
      %p310 = scmp.lt.s32.totalorder %s23, 3
      %p311 = pnand %p309, %p310
      %p312 = pneg %p311
      // Predicated region
      $region45: #{tpu_custom_call.1} parent=5 // pred_check
        _
      $region46: #{tpu_custom_call.1} parent=5 // pred_check_branch
        %314 = sbr.rel (%p311) target = $region48
      $region47: #{tpu_custom_call.1} parent=5 // pred_region
        %s315 = ssub.s32 %s23, 1
        %s316 = sand.u32 %s36, 1
        %s317 = scalar_lea.sflag [#allocation3], %s316
        %s318 = sand.u32 %s36, 1
        %s319 = smul.addr %s318, 8
        %s320 = scalar_lea.vmem [#allocation2], %s319
        // Predicated region
        $region49: #{tpu_custom_call.1} parent=47 // pred_check
          %p321 = pneg %p49
        $region50: #{tpu_custom_call.1} parent=47 // pred_check_branch
          %323 = sbr.rel (%p321) target = $region52
        $region51: #{tpu_custom_call.1} parent=47 // pred_region
          %324 = dma.done %s317, 128
        $region52: #{tpu_custom_call.1} parent=47 // pred_fallthru
          _
        %s325 = sand.u32 %s28, 1
        %s326 = scalar_lea.sflag [#allocation6], %s325
        %s327 = sand.u32 %s62, 1
        %s328 = smul.addr %s327, 32
        %s329 = scalar_lea.vmem [#allocation5], %s328
        // Predicated region
        $region53: #{tpu_custom_call.1} parent=47 // pred_check
          %p330 = pneg %p75
        $region54: #{tpu_custom_call.1} parent=47 // pred_check_branch
          %332 = sbr.rel (%p330) target = $region56
        $region55: #{tpu_custom_call.1} parent=47 // pred_region
          %333 = dma.done %s326, 512
        $region56: #{tpu_custom_call.1} parent=47 // pred_fallthru
          _
        // Predicated region
        $region57: #{tpu_custom_call.1} parent=47 // pred_check
          %p334 = pneg %p96
        $region58: #{tpu_custom_call.1} parent=47 // pred_check_branch
          %336 = sbr.rel (%p334) target = $region60
        $region59: #{tpu_custom_call.1} parent=47 // pred_region
          %337 = dma.done [#allocation6], 1024
        $region60: #{tpu_custom_call.1} parent=47 // pred_fallthru
          _
        // Predicated region
        $region61: #{tpu_custom_call.1} parent=47 // pred_check
          %p338 = pneg %p117
        $region62: #{tpu_custom_call.1} parent=47 // pred_check_branch
          %340 = sbr.rel (%p338) target = $region64
        $region63: #{tpu_custom_call.1} parent=47 // pred_region
          %341 = dma.done [#allocation9], 1024
        $region64: #{tpu_custom_call.1} parent=47 // pred_fallthru
          _
        // Predicated region
        $region65: #{tpu_custom_call.1} parent=47 // pred_check
          %p342 = pneg %p159
        $region66: #{tpu_custom_call.1} parent=47 // pred_check_branch
          %344 = sbr.rel (%p342) target = $region68
        $region67: #{tpu_custom_call.1} parent=47 // pred_region
          %345 = dma.done [#allocation9], 4096
        $region68: #{tpu_custom_call.1} parent=47 // pred_fallthru
          _
        %s346 = sand.u32 %s36, 1
        %s347 = scalar_lea.sflag [#allocation3], %s346
        %s348 = sand.u32 %s36, 1
        %s349 = smul.addr %s348, 8
        %s350 = scalar_lea.vmem [#allocation2], %s349
        %p351 = pneg %p49
        %p352 = pneg %p46
        %s353 = sand.u32 %s28, 1
        %s354 = scalar_lea.sflag [#allocation6], %s353
        %s355 = sand.u32 %s62, 1
        %s356 = smul.addr %s355, 32
        %s357 = scalar_lea.vmem [#allocation5], %s356
        %p358 = pneg %p75
        %p359 = pneg %p72
        %p360 = pneg %p96
        %p361 = pneg %p93
        %p362 = pneg %p117
        %p363 = pneg %p114
        %p364 = pneg %p138
        %p365 = pneg %p135
        %p366 = pneg %p159
        %p367 = pneg %p156
        %p368 = pneg %p180
        %p369 = pneg %p177
        %p370 = pneg %p206
        %p371 = pneg %p203
        %s372 = sand.u32 %s193, 1
        %s373 = scalar_lea.sflag [#allocation4], %s372
        %s374 = sand.u32 %s193, 1
        %s375 = smul.addr %s374, 8
        %s376 = scalar_lea.vmem [#allocation11], %s375
        %s377 = smul.u32 8, %s28
        %v378 = vld [vmem:[%s329] sm:$0xf]
        %v379 = vld [vmem:[%s329 + $0x4] sm:$0xf]
        %v380 = vld [vmem:[%s329 + $0x8] sm:$0xf]
        %v381 = vld [vmem:[%s329 + $0xc] sm:$0xf]
        %v382 = vld [vmem:[%s329 + $0x10] sm:$0xf]
        %v383 = vld [vmem:[%s329 + $0x14] sm:$0xf]
        %v384 = vld [vmem:[%s329 + $0x18] sm:$0xf]
        %v385 = vld [vmem:[%s329 + $0x1c] sm:$0xf]
        %vm386 = vcmask 257024
        %v387 = vsel %vm386, %v378, 0.0
        %v388 = vrot.slane %v387, 4
        %v389 = vadd.f32 %v387, %v388
        %v390 = vrot.slane %v389, 2
        %v391 = vadd.f32 %v389, %v390
        %v392 = vrot.slane %v391, 1
        %v393 = vadd.f32 %v391, %v392
        %v394 = vsel %vm386, %v379, 0.0
        %v395 = vrot.slane %v394, 4
        %v396 = vadd.f32 %v394, %v395
        %v397 = vrot.slane %v396, 2
        %v398 = vadd.f32 %v396, %v397
        %v399 = vrot.slane %v398, 1
        %v400 = vadd.f32 %v398, %v399
        %v401 = vsel %vm386, %v380, 0.0
        %v402 = vrot.slane %v401, 4
        %v403 = vadd.f32 %v401, %v402
        %v404 = vrot.slane %v403, 2
        %v405 = vadd.f32 %v403, %v404
        %v406 = vrot.slane %v405, 1
        %v407 = vadd.f32 %v405, %v406
        %v408 = vsel %vm386, %v381, 0.0
        %v409 = vrot.slane %v408, 4
        %v410 = vadd.f32 %v408, %v409
        %v411 = vrot.slane %v410, 2
        %v412 = vadd.f32 %v410, %v411
        %v413 = vrot.slane %v412, 1
        %v414 = vadd.f32 %v412, %v413
        %v415 = vsel %vm386, %v382, 0.0
        %v416 = vrot.slane %v415, 4
        %v417 = vadd.f32 %v415, %v416
        %v418 = vrot.slane %v417, 2
        %v419 = vadd.f32 %v417, %v418
        %v420 = vrot.slane %v419, 1
        %v421 = vadd.f32 %v419, %v420
        %v422 = vsel %vm386, %v383, 0.0
        %v423 = vrot.slane %v422, 4
        %v424 = vadd.f32 %v422, %v423
        %v425 = vrot.slane %v424, 2
        %v426 = vadd.f32 %v424, %v425
        %v427 = vrot.slane %v426, 1
        %v428 = vadd.f32 %v426, %v427
        %v429 = vsel %vm386, %v384, 0.0
        %v430 = vrot.slane %v429, 4
        %v431 = vadd.f32 %v429, %v430
        %v432 = vrot.slane %v431, 2
        %v433 = vadd.f32 %v431, %v432
        %v434 = vrot.slane %v433, 1
        %v435 = vadd.f32 %v433, %v434
        %v436 = vsel %vm386, %v385, 0.0
        %v437 = vrot.slane %v436, 4
        %v438 = vadd.f32 %v436, %v437
        %v439 = vrot.slane %v438, 2
        %v440 = vadd.f32 %v438, %v439
        %v441 = vrot.slane %v440, 1
        %v442 = vadd.f32 %v440, %v441
        %v443 = vld [vmem:[%s320] sm:$0xff]
        %v444 = vld [vmem:[#allocation7] sm:$0xff]
        %v445 = vld [vmem:[#allocation7 + $0x8] sm:$0xff]
        %v446 = vld [vmem:[#allocation7 + $0x10] sm:$0xff]
        %v447 = vld [vmem:[#allocation7 + $0x18] sm:$0xff]
        %v448 = vld [vmem:[#allocation7 + $0x20] sm:$0xff]
        %v449 = vld [vmem:[#allocation7 + $0x28] sm:$0xff]
        %v450 = vld [vmem:[#allocation7 + $0x30] sm:$0xff]
        %v451 = vld [vmem:[#allocation7 + $0x38] sm:$0xff]
        %v452 = vld [vmem:[#allocation8] sm:$0xff]
        %v453 = vld [vmem:[#allocation8 + $0x8] sm:$0xff]
        %v454 = vld [vmem:[#allocation8 + $0x10] sm:$0xff]
        %v455 = vld [vmem:[#allocation8 + $0x18] sm:$0xff]
        %v456 = vld [vmem:[#allocation8 + $0x20] sm:$0xff]
        %v457 = vld [vmem:[#allocation8 + $0x28] sm:$0xff]
        %v458 = vld [vmem:[#allocation8 + $0x30] sm:$0xff]
        %v459 = vld [vmem:[#allocation8 + $0x38] sm:$0xff]
        %vm468 = vcmask 1041409
        %v469 = vsel %vm468, %v400, %v393
        %vm470 = vcmask 1042434
        %v471 = vsel %vm470, %v407, %v469
        %vm472 = vcmask 1043459
        %v473 = vsel %vm472, %v414, %v471
        %vm474 = vcmask 1044484
        %v475 = vsel %vm474, %v421, %v473
        %vm476 = vcmask 1045509
        %v477 = vsel %vm476, %v428, %v475
        %vm478 = vcmask 1046534
        %v479 = vsel %vm478, %v435, %v477
        %vm480 = vcmask 1047559
        %v481 = vsel %vm480, %v442, %v479
        %vm482 = vcmask 261120
        %v483 = vsel %vm482, %v481, 0
        %485 = vmatprep.subr.mxu0 %v453
        %486 = vmatpush1.msra.mxu0 %v452
        %487 = vmatprep.subr.mxu0 %v455
        %488 = vmatpush1.msra.mxu0 %v454
        %489 = vmatprep.subr.mxu0 %v457
        %490 = vmatpush1.msra.mxu0 %v456
        %491 = vmatprep.subr.mxu0 %v459
        %492 = vmatpush1.msra.mxu0 %v458
        %493 = vmatprep.subr.mxu0 0.0
        %494 = vmatpush1.msra.mxu0 0.0
        %495 = vmatprep.subr.mxu0 0.0
        %496 = vmatpush1.msra.mxu0 0.0
        %497 = vmatprep.subr.mxu0 0.0
        %498 = vmatpush1.msra.mxu0 0.0
        %499 = vmatprep.subr.mxu0 0.0
        %500 = vmatpush1.msra.mxu0 0.0
        %501 = vmatprep.subr.mxu0 0.0
        %502 = vmatpush1.msra.mxu0 0.0
        %503 = vmatprep.subr.mxu0 0.0
        %504 = vmatpush1.msra.mxu0 0.0
        %505 = vmatprep.subr.mxu0 0.0
        %506 = vmatpush1.msra.mxu0 0.0
        %507 = vmatprep.subr.mxu0 0.0
        %508 = vmatpush1.msra.mxu0 0.0
        %509 = vmatprep.subr.mxu0 0.0
        %510 = vmatpush1.msra.mxu0 0.0
        %511 = vmatprep.subr.mxu0 0.0
        %512 = vmatpush1.msra.mxu0 0.0
        %513 = vmatprep.subr.mxu0 0.0
        %514 = vmatpush1.msra.mxu0 0.0
        %515 = vmatprep.subr.mxu0 0.0
        %516 = vmatpush1.msra.mxu0 0.0
        %517 = vmatprep.subr.mxu0 0.0
        %518 = vmatpush1.msra.mxu0 0.0
        %519 = vmatprep.subr.mxu0 0.0
        %520 = vmatpush1.msra.mxu0 0.0
        %521 = vmatprep.subr.mxu0 0.0
        %522 = vmatpush1.msra.mxu0 0.0
        %523 = vmatprep.subr.mxu0 0.0
        %524 = vmatpush1.msra.mxu0 0.0
        %525 = vmatprep.subr.mxu0 0.0
        %526 = vmatpush1.msra.mxu0 0.0
        %527 = vmatprep.subr.mxu0 0.0
        %528 = vmatpush1.msra.mxu0 0.0
        %529 = vmatprep.subr.mxu0 0.0
        %530 = vmatpush1.msra.mxu0 0.0
        %531 = vmatprep.subr.mxu0 0.0
        %532 = vmatpush1.msra.mxu0 0.0
        %533 = vmatprep.subr.mxu0 0.0
        %534 = vmatpush1.msra.mxu0 0.0
        %535 = vmatprep.subr.mxu0 0.0
        %536 = vmatpush1.msra.mxu0 0.0
        %537 = vmatprep.subr.mxu0 0.0
        %538 = vmatpush1.msra.mxu0 0.0
        %539 = vmatprep.subr.mxu0 0.0
        %540 = vmatpush1.msra.mxu0 0.0
        %541 = vmatprep.subr.mxu0 0.0
        %542 = vmatpush1.msra.mxu0 0.0
        %543 = vmatprep.subr.mxu0 0.0
        %544 = vmatpush1.msra.mxu0 0.0
        %545 = vmatprep.subr.mxu0 0.0
        %546 = vmatpush1.msra.mxu0 0.0
        %547 = vmatprep.subr.mxu0 0.0
        %548 = vmatpush1.msra.mxu0 0.0
        %549 = vmatprep.mubr.f32.mxu0 0.0
        %550 = vmatmul.mubr.f32.gmra.mrb[0].mxu0 %v483
        %v551 = vpop.f32.mrb[0].mxu0
        %v552 = vadd.f32 0.0, %v551
        %v553 = vpop.f32.mrb[0].mxu0
        %v554 = vadd.f32 0.0, %v553
        %555 = vdwg.mxu0
        %v557 = vsel %vm482, %v443, 0
        %559 = vmatprep.subr.mxu0 %v445
        %560 = vmatpush1.msra.mxu0 %v444
        %561 = vmatprep.subr.mxu0 %v447
        %562 = vmatpush1.msra.mxu0 %v446
        %563 = vmatprep.subr.mxu0 %v449
        %564 = vmatpush1.msra.mxu0 %v448
        %565 = vmatprep.subr.mxu0 %v451
        %566 = vmatpush1.msra.mxu0 %v450
        %567 = vmatprep.subr.mxu0 0.0
        %568 = vmatpush1.msra.mxu0 0.0
        %569 = vmatprep.subr.mxu0 0.0
        %570 = vmatpush1.msra.mxu0 0.0
        %571 = vmatprep.subr.mxu0 0.0
        %572 = vmatpush1.msra.mxu0 0.0
        %573 = vmatprep.subr.mxu0 0.0
        %574 = vmatpush1.msra.mxu0 0.0
        %575 = vmatprep.subr.mxu0 0.0
        %576 = vmatpush1.msra.mxu0 0.0
        %577 = vmatprep.subr.mxu0 0.0
        %578 = vmatpush1.msra.mxu0 0.0
        %579 = vmatprep.subr.mxu0 0.0
        %580 = vmatpush1.msra.mxu0 0.0
        %581 = vmatprep.subr.mxu0 0.0
        %582 = vmatpush1.msra.mxu0 0.0
        %583 = vmatprep.subr.mxu0 0.0
        %584 = vmatpush1.msra.mxu0 0.0
        %585 = vmatprep.subr.mxu0 0.0
        %586 = vmatpush1.msra.mxu0 0.0
        %587 = vmatprep.subr.mxu0 0.0
        %588 = vmatpush1.msra.mxu0 0.0
        %589 = vmatprep.subr.mxu0 0.0
        %590 = vmatpush1.msra.mxu0 0.0
        %591 = vmatprep.subr.mxu0 0.0
        %592 = vmatpush1.msra.mxu0 0.0
        %593 = vmatprep.subr.mxu0 0.0
        %594 = vmatpush1.msra.mxu0 0.0
        %595 = vmatprep.subr.mxu0 0.0
        %596 = vmatpush1.msra.mxu0 0.0
        %597 = vmatprep.subr.mxu0 0.0
        %598 = vmatpush1.msra.mxu0 0.0
        %599 = vmatprep.subr.mxu0 0.0
        %600 = vmatpush1.msra.mxu0 0.0
        %601 = vmatprep.subr.mxu0 0.0
        %602 = vmatpush1.msra.mxu0 0.0
        %603 = vmatprep.subr.mxu0 0.0
        %604 = vmatpush1.msra.mxu0 0.0
        %605 = vmatprep.subr.mxu0 0.0
        %606 = vmatpush1.msra.mxu0 0.0
        %607 = vmatprep.subr.mxu0 0.0
        %608 = vmatpush1.msra.mxu0 0.0
        %609 = vmatprep.subr.mxu0 0.0
        %610 = vmatpush1.msra.mxu0 0.0
        %611 = vmatprep.subr.mxu0 0.0
        %612 = vmatpush1.msra.mxu0 0.0
        %613 = vmatprep.subr.mxu0 0.0
        %614 = vmatpush1.msra.mxu0 0.0
        %615 = vmatprep.subr.mxu0 0.0
        %616 = vmatpush1.msra.mxu0 0.0
        %617 = vmatprep.subr.mxu0 0.0
        %618 = vmatpush1.msra.mxu0 0.0
        %619 = vmatprep.subr.mxu0 0.0
        %620 = vmatpush1.msra.mxu0 0.0
        %621 = vmatprep.subr.mxu0 0.0
        %622 = vmatpush1.msra.mxu0 0.0
        %623 = vmatprep.mubr.f32.mxu0 0.0
        %624 = vmatmul.mubr.f32.gmra.mrb[0].mxu0 %v557
        %v625 = vpop.f32.mrb[0].mxu0
        %v626 = vadd.f32 %v552, %v625
        %v627 = vpop.f32.mrb[0].mxu0
        %v628 = vadd.f32 %v554, %v627
        %629 = vdwg.mxu0
        %v630 = vld [vmem:[%s4] sm:$0x3]
        %v632 = vlaneseq
        %v633 = vshrl.u32 %v632, 7
        %v634 = vsub.s32 0, %v633
        %v635 = vrot.slane %v630, %v634
        %v636 = vlaneseq
        %v637 = vshrl.u32 %v636, 7
        %v638 = vsub.s32 1, %v637
        %v639 = vrot.slane %v630, %v638
        %v642 = vadd.f32 %v626, %v635
        %v643 = vadd.f32 %v628, %v639
        %v644 = vmax.f32 %v642, 0.0
        %v645 = vmax.f32 %v643, 0.0
        %v646 = vld [vmem:[#allocation10] sm:$0xff]
        %v647 = vld [vmem:[#allocation10 + $0x8] sm:$0xff]
        %v648 = vld [vmem:[#allocation10 + $0x10] sm:$0xff]
        %v649 = vld [vmem:[#allocation10 + $0x18] sm:$0xff]
        %v650 = vld [vmem:[#allocation10 + $0x20] sm:$0xff]
        %v651 = vld [vmem:[#allocation10 + $0x28] sm:$0xff]
        %v652 = vld [vmem:[#allocation10 + $0x30] sm:$0xff]
        %v653 = vld [vmem:[#allocation10 + $0x38] sm:$0xff]
        %v654 = vld [vmem:[#allocation10 + $0x40] sm:$0xff]
        %v655 = vld [vmem:[#allocation10 + $0x48] sm:$0xff]
        %v656 = vld [vmem:[#allocation10 + $0x50] sm:$0xff]
        %v657 = vld [vmem:[#allocation10 + $0x58] sm:$0xff]
        %v658 = vld [vmem:[#allocation10 + $0x60] sm:$0xff]
        %v659 = vld [vmem:[#allocation10 + $0x68] sm:$0xff]
        %v660 = vld [vmem:[#allocation10 + $0x70] sm:$0xff]
        %v661 = vld [vmem:[#allocation10 + $0x78] sm:$0xff]
        %v662 = vld [vmem:[#allocation10 + $0x80] sm:$0xff]
        %v663 = vld [vmem:[#allocation10 + $0x88] sm:$0xff]
        %v664 = vld [vmem:[#allocation10 + $0x90] sm:$0xff]
        %v665 = vld [vmem:[#allocation10 + $0x98] sm:$0xff]
        %v666 = vld [vmem:[#allocation10 + $0xa0] sm:$0xff]
        %v667 = vld [vmem:[#allocation10 + $0xa8] sm:$0xff]
        %v668 = vld [vmem:[#allocation10 + $0xb0] sm:$0xff]
        %v669 = vld [vmem:[#allocation10 + $0xb8] sm:$0xff]
        %v670 = vld [vmem:[#allocation10 + $0xc0] sm:$0xff]
        %v671 = vld [vmem:[#allocation10 + $0xc8] sm:$0xff]
        %v672 = vld [vmem:[#allocation10 + $0xd0] sm:$0xff]
        %v673 = vld [vmem:[#allocation10 + $0xd8] sm:$0xff]
        %v674 = vld [vmem:[#allocation10 + $0xe0] sm:$0xff]
        %v675 = vld [vmem:[#allocation10 + $0xe8] sm:$0xff]
        %v676 = vld [vmem:[#allocation10 + $0xf0] sm:$0xff]
        %v677 = vld [vmem:[#allocation10 + $0xf8] sm:$0xff]
        %v678 = vld [vmem:[%s6] sm:$0x1]
        %v680 = vlaneseq
        %v681 = vshrl.u32 %v680, 7
        %v682 = vsub.s32 0, %v681
        %v683 = vrot.slane %v678, %v682
        %685 = vmatprep.subr.mxu0 0.0
        %686 = vmatpush1.msra.mxu0 %v646
        %687 = vmatprep.subr.mxu0 0.0
        %688 = vmatpush1.msra.mxu0 %v647
        %689 = vmatprep.subr.mxu0 0.0
        %690 = vmatpush1.msra.mxu0 %v648
        %691 = vmatprep.subr.mxu0 0.0
        %692 = vmatpush1.msra.mxu0 %v649
        %693 = vmatprep.subr.mxu0 0.0
        %694 = vmatpush1.msra.mxu0 %v650
        %695 = vmatprep.subr.mxu0 0.0
        %696 = vmatpush1.msra.mxu0 %v651
        %697 = vmatprep.subr.mxu0 0.0
        %698 = vmatpush1.msra.mxu0 %v652
        %699 = vmatprep.subr.mxu0 0.0
        %700 = vmatpush1.msra.mxu0 %v653
        %701 = vmatprep.subr.mxu0 0.0
        %702 = vmatpush1.msra.mxu0 %v654
        %703 = vmatprep.subr.mxu0 0.0
        %704 = vmatpush1.msra.mxu0 %v655
        %705 = vmatprep.subr.mxu0 0.0
        %706 = vmatpush1.msra.mxu0 %v656
        %707 = vmatprep.subr.mxu0 0.0
        %708 = vmatpush1.msra.mxu0 %v657
        %709 = vmatprep.subr.mxu0 0.0
        %710 = vmatpush1.msra.mxu0 %v658
        %711 = vmatprep.subr.mxu0 0.0
        %712 = vmatpush1.msra.mxu0 %v659
        %713 = vmatprep.subr.mxu0 0.0
        %714 = vmatpush1.msra.mxu0 %v660
        %715 = vmatprep.subr.mxu0 0.0
        %716 = vmatpush1.msra.mxu0 %v661
        %717 = vmatprep.subr.mxu0 0.0
        %718 = vmatpush1.msra.mxu0 %v662
        %719 = vmatprep.subr.mxu0 0.0
        %720 = vmatpush1.msra.mxu0 %v663
        %721 = vmatprep.subr.mxu0 0.0
        %722 = vmatpush1.msra.mxu0 %v664
        %723 = vmatprep.subr.mxu0 0.0
        %724 = vmatpush1.msra.mxu0 %v665
        %725 = vmatprep.subr.mxu0 0.0
        %726 = vmatpush1.msra.mxu0 %v666
        %727 = vmatprep.subr.mxu0 0.0
        %728 = vmatpush1.msra.mxu0 %v667
        %729 = vmatprep.subr.mxu0 0.0
        %730 = vmatpush1.msra.mxu0 %v668
        %731 = vmatprep.subr.mxu0 0.0
        %732 = vmatpush1.msra.mxu0 %v669
        %733 = vmatprep.subr.mxu0 0.0
        %734 = vmatpush1.msra.mxu0 %v670
        %735 = vmatprep.subr.mxu0 0.0
        %736 = vmatpush1.msra.mxu0 %v671
        %737 = vmatprep.subr.mxu0 0.0
        %738 = vmatpush1.msra.mxu0 %v672
        %739 = vmatprep.subr.mxu0 0.0
        %740 = vmatpush1.msra.mxu0 %v673
        %741 = vmatprep.subr.mxu0 0.0
        %742 = vmatpush1.msra.mxu0 %v674
        %743 = vmatprep.subr.mxu0 0.0
        %744 = vmatpush1.msra.mxu0 %v675
        %745 = vmatprep.subr.mxu0 0.0
        %746 = vmatpush1.msra.mxu0 %v676
        %747 = vmatprep.subr.mxu0 0.0
        %748 = vmatpush1.msra.mxu0 %v677
        %749 = vmatprep.mubr.f32.mxu0 %v645
        %750 = vmatmul.mubr.f32.gmra.mrb[0].mxu0 %v644
        %v751 = vpop.f32.mrb[0].mxu0
        %v752 = vadd.f32 %v683, %v751
        %v753 = vpop.f32.mrb[0].mxu0
        %754 = vdwg.mxu0
        %755 = vst [vmem:[%s376] sm:$0xff] %v752
        %s756 = sand.u32 %s193, 1
        %s757 = scalar_lea.sflag [#allocation4], %s756
        %s758 = sand.u32 %s193, 1
        %s759 = smul.addr %s758, 8
        %s760 = scalar_lea.vmem [#allocation11], %s759
        // Predicated region
        $region69: #{tpu_custom_call.1} parent=47 // pred_check
          %p761 = pneg %p203
        $region70: #{tpu_custom_call.1} parent=47 // pred_check_branch
          %763 = sbr.rel (%p761) target = $region72
        $region71: #{tpu_custom_call.1} parent=47 // pred_region
          %s765 = ssub.s32 128, 128
          %766 = vsyncadd %s757, %s765
          %s767 = smul.addr %s28, 128
          %s768 = scalar_lea.hbm %s7, %s767
          %s770 = sshll.u32 %s760, 4
          %s771 = int_to_ptr.vmem [resolvable:$true] %s770
          %773 = dma.vmem_to_hbm [thread:$0]  %s771, 128, %s768, %s757
        $region72: #{tpu_custom_call.1} parent=47 // pred_fallthru
          _
      $region48: #{tpu_custom_call.1} parent=5 // pred_fallthru
        _
      %p774 = scmp.le.s32.totalorder 2, %s23
      // Predicated region
      $region73: #{tpu_custom_call.1} parent=5 // pred_check
        %p775 = pneg %p774
      $region74: #{tpu_custom_call.1} parent=5 // pred_check_branch
        %777 = sbr.rel (%p775) target = $region76
      $region75: #{tpu_custom_call.1} parent=5 // pred_region
        %s778 = ssub.s32 %s23, 2
        // Predicated region
        $region77: #{tpu_custom_call.1} parent=75 // pred_check
          %p779 = pneg %p209
        $region78: #{tpu_custom_call.1} parent=75 // pred_check_branch
          %781 = sbr.rel (%p779) target = $region80
        $region79: #{tpu_custom_call.1} parent=75 // pred_region
          %s782 = sand.u32 %s194, 1
          %s783 = scalar_lea.sflag [#allocation4], %s782
          %s784 = sand.u32 %s194, 1
          %s785 = smul.addr %s784, 8
          %s786 = scalar_lea.vmem [#allocation11], %s785
          %787 = dma.done %s783, 128
        $region80: #{tpu_custom_call.1} parent=75 // pred_fallthru
          _
      $region76: #{tpu_custom_call.1} parent=5 // pred_fallthru
        _
    $region6: #{tpu_custom_call.1} parent=1 // loop_footer
      %s27 = sadd.s32 1, %s23
    $region7: #{tpu_custom_call.1} parent=1 // loop_footer_branch
      %22 = sbr.rel target = $region3
    $region8: #{tpu_custom_call.1} parent=1 // loop_exit
      _
    %788 = vsyncpa [#allocation3], 1
    %s789 = scalar_lea.sflag [#allocation3], 1
    %790 = vsyncpa %s789, 1
    %791 = vsyncpa [#allocation6], 1
    %s792 = scalar_lea.sflag [#allocation6], 1
    %793 = vsyncpa %s792, 1
    %794 = vsyncpa [#allocation9], 1
    %795 = vsyncpa [#allocation4], 1
    %s796 = scalar_lea.sflag [#allocation4], 1
    %797 = vsyncpa %s796, 1

</llo_original>
